<compile_context>
chip_gen: v7x
topology: tpu7x:2x2x1
jax: 0.10.0
libtpu: 0.0.40
codegen_flags: <defaults>
</compile_context>

<pallas_src>
import functools

import jax
import jax.numpy as jnp
from jax.experimental import pallas as pl
from jax.experimental.pallas import tpu as pltpu


LN_EPS = 1e-5  # nn.LayerNorm default


# --------------------------------------------------------------------------- helpers
def _round_up(x, m):
    return (x + m - 1) // m * m


def _gelu_exact(x):
    # torch.nn.GELU() default = exact erf formulation
    return 0.5 * x * (1.0 + jax.lax.erf(x * 0.7071067811865476))


def _layernorm(x, gamma, beta):
    # plain LayerNorm (used by the pure-JAX reference)
    mean = jnp.mean(x, axis=-1, keepdims=True)
    xc = x - mean
    var = jnp.mean(xc * xc, axis=-1, keepdims=True)
    return xc * jax.lax.rsqrt(var + LN_EPS) * gamma + beta


def _masked_layernorm(x, gamma, beta, cmask, inv_n):
    # LayerNorm over the first `out_dim` columns of a lane-padded row.
    # `x` is exactly zero in the padded columns (weights/biases are zero-padded),
    # `cmask` zeroes (x - mean) there, and `inv_n` = 1/out_dim, so the statistics
    # match an unpadded LayerNorm bit-for-bit in exact arithmetic.
    mean = jnp.sum(x, axis=-1, keepdims=True) * inv_n
    xc = (x - mean) * cmask
    var = jnp.sum(xc * xc, axis=-1, keepdims=True) * inv_n
    return xc * jax.lax.rsqrt(var + LN_EPS) * gamma + beta


def _vmem_capacity_bytes():
    try:
        return int(pltpu.get_tpu_info().vmem_capacity_bytes)
    except Exception:
        return 64 << 20  # conservative fallback: v7x per-TensorCore VMEM


def _num_tensorcores():
    try:
        kind = jax.devices()[0].device_kind.lower()
    except Exception:
        return 1
    return 2 if ("v7" in kind or "tpu7" in kind) else 1


# --------------------------------------------------------------------------- kernel
def _fused_kernel(nrows_ref, v_ref, t_ref, wv_ref, wt_ref, wf_ref, vec_ref, out_ref,
                  *, out_dim):
    """One batch tile.

    wv_ref : (Dv, 3*Dp) = [Wv | Wgv[:Dv] | Wgt[:Dv]]   (vision-side fused weights)
    wt_ref : (Dt, 3*Dp) = [Wt | Wgv[Dv:] | Wgt[Dv:]]   (text-side fused weights)
    wf_ref : (Dp, Dp)     fusion projection weight (lane-padded)
    vec_ref: (12, Dp)     packed f32 [bv, bt, bgv, bgt, gv, betav, gt, betat,
                                      bf, gf, betaf, column_mask]
    Dp = out_dim rounded up to a multiple of 128 (lane-dense column blocks / store).
    """
    dp = out_ref.shape[-1]
    tb = out_ref.shape[0]
    cdt = wv_ref.dtype                       # MXU compute dtype (bf16 or f32)
    inv_n = jnp.float32(1.0 / out_dim)

    # Mask rows past the true batch size (ragged last tile) -> deterministic zeros;
    # out-of-bounds output rows are dropped by the pipeline, so no wrapper-side pad.
    rows = pl.program_id(0) * tb + jax.lax.broadcasted_iota(jnp.int32, (tb, 1), 0)
    rmask = rows < nrows_ref[0]
    v = jnp.where(rmask, v_ref[...], 0.0).astype(cdt)
    t = jnp.where(rmask, t_ref[...], 0.0).astype(cdt)

    # One wide matmul per modality (f32 accumulation):
    #   cols [0:Dp)      -> modality transform Linear (pre-bias)
    #   cols [Dp:2*Dp)   -> this modality's contribution to the vision gate
    #   cols [2*Dp:3*Dp) -> this modality's contribution to the text gate
    vp = jnp.dot(v, wv_ref[...], preferred_element_type=jnp.float32)
    tp = jnp.dot(t, wt_ref[...], preferred_element_type=jnp.float32)

    vec = vec_ref[...]
    b_v, b_t = vec[0:1], vec[1:2]
    b_gv, b_gt = vec[2:3], vec[3:4]
    g_v, be_v = vec[4:5], vec[5:6]
    g_t, be_t = vec[6:7], vec[7:8]
    b_f, g_f, be_f = vec[8:9], vec[9:10], vec[10:11]
    cmask = vec[11:12]                       # 1.0 on real output columns, 0.0 on padding

    # gates: sigmoid(concat([v, t]) @ Wg + bg) == sigmoid(v @ Wg_v + t @ Wg_t + bg)
    vision_gate = jax.nn.sigmoid(vp[:, dp:2 * dp] + tp[:, dp:2 * dp] + b_gv)
    text_gate = jax.nn.sigmoid(vp[:, 2 * dp:] + tp[:, 2 * dp:] + b_gt)

    # modality transforms: GELU(LayerNorm(Linear(x)))
    v_tr = _gelu_exact(_masked_layernorm(vp[:, :dp] + b_v, g_v, be_v, cmask, inv_n))
    t_tr = _gelu_exact(_masked_layernorm(tp[:, :dp] + b_t, g_t, be_t, cmask, inv_n))

    fused = v_tr * vision_gate + t_tr * text_gate

    # fusion projection: (Dropout = identity in eval) -> Linear -> LayerNorm
    f_lin = jnp.dot(fused.astype(cdt), wf_ref[...],
                    preferred_element_type=jnp.float32) + b_f
    out_ref[...] = _masked_layernorm(f_lin, g_f, be_f, cmask, inv_n).astype(out_ref.dtype)


# --------------------------------------------------------------------------- wrapper
def _pack_params(params, compute_dtype):
    """Fold + lane-pad the weights once (factory time, not per call)."""
    Dv, Do = params["wv"].shape
    Dt = params["wt"].shape[0]
    Dp = _round_up(Do, 128)
    pc = Dp - Do

    def pad_cols(w):
        return jnp.pad(w, ((0, 0), (0, pc)))

    wgv, wgt = params["wgv"], params["wgt"]
    w_vis = jnp.concatenate(
        [pad_cols(params["wv"]), pad_cols(wgv[:Dv]), pad_cols(wgt[:Dv])],
        axis=1).astype(compute_dtype)                                  # (Dv, 3*Dp)
    w_txt = jnp.concatenate(
        [pad_cols(params["wt"]), pad_cols(wgv[Dv:]), pad_cols(wgt[Dv:])],
        axis=1).astype(compute_dtype)                                  # (Dt, 3*Dp)
    w_fus = jnp.pad(params["wf"], ((0, pc), (0, pc))).astype(compute_dtype)  # (Dp, Dp)

    def pad_vec(v):
        return jnp.pad(v.astype(jnp.float32), ((0, 0), (0, pc)))

    col_mask = (jnp.arange(Dp) < Do).astype(jnp.float32)[None, :]
    vec = jnp.concatenate(
        [pad_vec(params[k]) for k in
         ("bv", "bt", "bgv", "bgt", "gv", "betav", "gt", "betat", "bf", "gf", "betaf")]
        + [col_mask], axis=0)                                          # (12, Dp)

    return w_vis, w_txt, w_fus, vec, (Dv, Dt, Do, Dp)


def make_gated_multimodal_fusion(params, *, compute_dtype=jnp.bfloat16, batch_tile=None):
    """Pack weights once and return a jitted forward(vision, text) callable."""
    w_vis, w_txt, w_fus, vec, (Dv, Dt, Do, Dp) = _pack_params(params, compute_dtype)

    n_tc = _num_tensorcores()
    vmem_cap = _vmem_capacity_bytes()
    vmem_limit = int(vmem_cap * 3 // 4)          # ~48 MiB on v7x, ~96 MiB on v5e/v6e
    default_tile = 512 if vmem_cap >= (100 << 20) else 256
    tile = batch_tile if batch_tile is not None else default_tile

    kernel = functools.partial(_fused_kernel, out_dim=Do)

    @jax.jit
    def forward(vision, text):
        B = vision.shape[0]
        assert text.shape[0] == B and vision.shape[1] == Dv and text.shape[1] == Dt

        B8 = _round_up(B, 8)
        tb = min(tile, B8)
        # Split a single full-batch tile into two grid steps only on 2-TensorCore
        # chips (v7x): on single-TC chips the grid is a serial loop and splitting
        # would only add pipeline/per-step overhead.
        if n_tc >= 2 and tb == B8 and B8 >= 16 and B8 % 16 == 0:
            tb = B8 // 2
        num_tiles = pl.cdiv(B, tb)

        nrows = jnp.full((1,), B, jnp.int32)     # scalar-prefetched true batch size

        out = pl.pallas_call(
            kernel,
            out_shape=jax.ShapeDtypeStruct((B, Dp), vision.dtype),
            grid_spec=pltpu.PrefetchScalarGridSpec(
                num_scalar_prefetch=1,
                grid=(num_tiles,),
                in_specs=[
                    pl.BlockSpec((tb, Dv), lambda i, n: (i, 0)),
                    pl.BlockSpec((tb, Dt), lambda i, n: (i, 0)),
                    # Constant index_maps: the pipeline skips re-DMA of the weights
                    # across grid steps (they stay resident in VMEM).
                    pl.BlockSpec((Dv, 3 * Dp), lambda i, n: (0, 0)),
                    pl.BlockSpec((Dt, 3 * Dp), lambda i, n: (0, 0)),
                    pl.BlockSpec((Dp, Dp), lambda i, n: (0, 0)),
                    pl.BlockSpec((12, Dp), lambda i, n: (0, 0)),
                ],
                out_specs=pl.BlockSpec((tb, Dp), lambda i, n: (i, 0)),
            ),
            compiler_params=pltpu.CompilerParams(
                dimension_semantics=("parallel",),
                vmem_limit_bytes=vmem_limit,
            ),
        )(nrows, vision, text, w_vis, w_txt, w_fus, vec)

        return out[:, :Do] if Dp != Do else out

    return forward


# --------------------------------------------------------------------------- reference
def init_params(key, vision_dim, text_dim, output_dim, dtype=jnp.float32):
    """Deterministic synthetic parameter init (shapes match the PyTorch module)."""
    dc = vision_dim + text_dim
    ks = jax.random.split(key, 5)

    def lin(k, din, dout):
        bound = 1.0 / jnp.sqrt(din)
        kw, kb = jax.random.split(k)
        w = jax.random.uniform(kw, (din, dout), dtype, -bound, bound)
        b = jax.random.uniform(kb, (1, dout), dtype, -bound, bound)
        return w, b

    wgv, bgv = lin(ks[0], dc, output_dim)
    wgt, bgt = lin(ks[1], dc, output_dim)
    wv, bv = lin(ks[2], vision_dim, output_dim)
    wt, bt = lin(ks[3], text_dim, output_dim)
    wf, bf = lin(ks[4], output_dim, output_dim)

    ones = jnp.ones((1, output_dim), dtype)
    zeros = jnp.zeros((1, output_dim), dtype)
    return dict(
        wgv=wgv, bgv=bgv,
        wgt=wgt, bgt=bgt,
        wv=wv, bv=bv, gv=ones, betav=zeros,
        wt=wt, bt=bt, gt=ones, betat=zeros,
        wf=wf, bf=bf, gf=ones, betaf=zeros,
    )


def reference_forward(vision, text, p):
    """Pure-JAX reference mirroring the PyTorch forward (eval mode, f32)."""
    c = jnp.concatenate([vision, text], axis=1)
    vg = jax.nn.sigmoid(c @ p["wgv"] + p["bgv"])
    tg = jax.nn.sigmoid(c @ p["wgt"] + p["bgt"])
    v_tr = _gelu_exact(_layernorm(vision @ p["wv"] + p["bv"], p["gv"], p["betav"]))
    t_tr = _gelu_exact(_layernorm(text @ p["wt"] + p["bt"], p["gt"], p["betat"]))
    fused = v_tr * vg + t_tr * tg
    return _layernorm(fused @ p["wf"] + p["bf"], p["gf"], p["betaf"])


# --------------------------------------------------------------------------- main
if __name__ == "__main__":
    key = jax.random.PRNGKey(0)
    k_v, k_t, k_p1, k_p2 = jax.random.split(key, 4)

    ok = True

    # Case 1: output_dim NOT a multiple of 128 (exercises lane padding + column mask),
    # f32 compute path, lane-aligned batch.
    vision_dim, text_dim, output_dim = 32, 48, 32
    params = init_params(k_p1, vision_dim, text_dim, output_dim)
    fwd_f32 = make_gated_multimodal_fusion(params, compute_dtype=jnp.float32)
    B = 8
    vision = jax.random.normal(k_v, (B, vision_dim), jnp.float32)
    text = jax.random.normal(k_t, (B, text_dim), jnp.float32)
    out = jax.block_until_ready(fwd_f32(vision, text))
    ref = reference_forward(vision, text, params)
    ok &= out.shape == (B, output_dim)
    ok &= bool(jnp.allclose(out, ref, atol=1e-4, rtol=1e-4))

    # Case 1b: same params, bf16 MXU operands (production default) -> looser tolerance.
    fwd_bf16 = make_gated_multimodal_fusion(params)  # compute_dtype=bf16
    out = jax.block_until_ready(fwd_bf16(vision, text))
    ok &= out.shape == (B, output_dim)
    ok &= bool(jnp.allclose(out, ref, atol=5e-2, rtol=5e-2))

    # Case 2: output_dim a multiple of 128 (no column padding) and a ragged batch
    # (exercises the scalar-prefetched row mask / partial last tile).
    vision_dim, text_dim, output_dim = 40, 24, 128
    params2 = init_params(k_p2, vision_dim, text_dim, output_dim)
    fwd2 = make_gated_multimodal_fusion(params2, compute_dtype=jnp.float32)
    B = 10
    vision = jax.random.normal(k_v, (B, vision_dim), jnp.float32)
    text = jax.random.normal(k_t, (B, text_dim), jnp.float32)
    out = jax.block_until_ready(fwd2(vision, text))
    ref = reference_forward(vision, text, params2)
    ok &= out.shape == (B, output_dim)
    ok &= bool(jnp.allclose(out, ref, atol=1e-4, rtol=1e-4))

    assert ok, "mismatch vs JAX reference"
    print("KERNEL_OK")
</pallas_src>

<mosaic_0001>
module attributes {stable_mosaic.version = 11 : i64} {
  func.func @_fused_kernel(%arg0: i32, %arg1: memref<1xi32, #tpu.memory_space<smem>>, %arg2: memref<8x32xf32, #tpu.memory_space<vmem>>, %arg3: memref<8x48xf32, #tpu.memory_space<vmem>>, %arg4: memref<32x384xf32, #tpu.memory_space<vmem>>, %arg5: memref<48x384xf32, #tpu.memory_space<vmem>>, %arg6: memref<128x128xf32, #tpu.memory_space<vmem>>, %arg7: memref<12x128xf32, #tpu.memory_space<vmem>>, %arg8: memref<8x128xf32, #tpu.memory_space<vmem>>) attributes {dimension_semantics = [#tpu.dimension_semantics<parallel>], iteration_bounds = array<i64: 1>, scalar_prefetch = 1 : i64, scratch_operands = 0 : i64, tpu.core_type = #tpu.core_type<tc>, window_params = [{transform_indices = @transform_0, window_bounds = array<i64: 8, 32>}, {transform_indices = @transform_1, window_bounds = array<i64: 8, 48>}, {pipeline_mode = #tpu.pipeline_mode<synchronous>, transform_indices = @transform_2, window_bounds = array<i64: 32, 384>}, {pipeline_mode = #tpu.pipeline_mode<synchronous>, transform_indices = @transform_3, window_bounds = array<i64: 48, 384>}, {pipeline_mode = #tpu.pipeline_mode<synchronous>, transform_indices = @transform_4, window_bounds = array<i64: 128, 128>}, {pipeline_mode = #tpu.pipeline_mode<synchronous>, transform_indices = @transform_5, window_bounds = array<i64: 12, 128>}, {transform_indices = @transform_6, window_bounds = array<i64: 8, 128>}]} {
    %c8_i32 = arith.constant 8 : i32
    %0 = arith.muli %arg0, %c8_i32 : i32
    %1 = tpu.iota {dimensions = array<i32: 0>} : vector<8x1xi32>
    %2 = vector.broadcast %0 : i32 to vector<8x1xi32>
    %3 = arith.addi %2, %1 : vector<8x1xi32>
    %c0 = arith.constant 0 : index
    %4 = memref.load %arg1[%c0] : memref<1xi32, #tpu.memory_space<smem>>
    %5 = vector.broadcast %4 : i32 to vector<8x1xi32>
    %6 = arith.cmpi slt, %3, %5 : vector<8x1xi32>
    %c0_0 = arith.constant 0 : index
    %c0_1 = arith.constant 0 : index
    %7 = vector.load %arg2[%c0_0, %c0_1] : memref<8x32xf32, #tpu.memory_space<vmem>>, vector<8x32xf32>
    %cst = arith.constant 0.000000e+00 : f32
    %8 = vector.shape_cast %6 : vector<8x1xi1> to vector<8x1xi1>
    %9 = vector.broadcast %8 : vector<8x1xi1> to vector<8x32xi1>
    %10 = vector.broadcast %cst : f32 to vector<8x32xf32>
    %11 = arith.select %9, %7, %10 : vector<8x32xi1>, vector<8x32xf32>
    %c0_2 = arith.constant 0 : index
    %c0_3 = arith.constant 0 : index
    %12 = vector.load %arg3[%c0_2, %c0_3] : memref<8x48xf32, #tpu.memory_space<vmem>>, vector<8x48xf32>
    %cst_4 = arith.constant 0.000000e+00 : f32
    %13 = vector.shape_cast %6 : vector<8x1xi1> to vector<8x1xi1>
    %14 = vector.broadcast %13 : vector<8x1xi1> to vector<8x48xi1>
    %15 = vector.broadcast %cst_4 : f32 to vector<8x48xf32>
    %16 = arith.select %14, %12, %15 : vector<8x48xi1>, vector<8x48xf32>
    %c0_5 = arith.constant 0 : index
    %c0_6 = arith.constant 0 : index
    %17 = vector.load %arg4[%c0_5, %c0_6] : memref<32x384xf32, #tpu.memory_space<vmem>>, vector<32x384xf32>
    %cst_7 = arith.constant dense<0.000000e+00> : vector<8x384xf32>
    %18 = tpu.matmul %11, %17, %cst_7 {dimension_numbers = #tpu.dot_dimension_numbers<[1], [0], [0], [1], [0, 0, 1, 1], [], []>} : vector<8x32xf32>, vector<32x384xf32>, vector<8x384xf32> -> vector<8x384xf32>
    %c0_8 = arith.constant 0 : index
    %c0_9 = arith.constant 0 : index
    %19 = vector.load %arg5[%c0_8, %c0_9] : memref<48x384xf32, #tpu.memory_space<vmem>>, vector<48x384xf32>
    %cst_10 = arith.constant dense<0.000000e+00> : vector<8x384xf32>
    %20 = tpu.matmul %16, %19, %cst_10 {dimension_numbers = #tpu.dot_dimension_numbers<[1], [0], [0], [1], [0, 0, 1, 1], [], []>} : vector<8x48xf32>, vector<48x384xf32>, vector<8x384xf32> -> vector<8x384xf32>
    %c0_11 = arith.constant 0 : index
    %c0_12 = arith.constant 0 : index
    %21 = vector.load %arg7[%c0_11, %c0_12] : memref<12x128xf32, #tpu.memory_space<vmem>>, vector<12x128xf32>
    %22 = vector.extract_strided_slice %21 {offsets = [0, 0], sizes = [1, 128], strides = [1, 1]} : vector<12x128xf32> to vector<1x128xf32>
    %23 = vector.extract_strided_slice %21 {offsets = [1, 0], sizes = [1, 128], strides = [1, 1]} : vector<12x128xf32> to vector<1x128xf32>
    %24 = vector.extract_strided_slice %21 {offsets = [2, 0], sizes = [1, 128], strides = [1, 1]} : vector<12x128xf32> to vector<1x128xf32>
    %25 = vector.extract_strided_slice %21 {offsets = [3, 0], sizes = [1, 128], strides = [1, 1]} : vector<12x128xf32> to vector<1x128xf32>
    %26 = vector.extract_strided_slice %21 {offsets = [4, 0], sizes = [1, 128], strides = [1, 1]} : vector<12x128xf32> to vector<1x128xf32>
    %27 = vector.extract_strided_slice %21 {offsets = [5, 0], sizes = [1, 128], strides = [1, 1]} : vector<12x128xf32> to vector<1x128xf32>
    %28 = vector.extract_strided_slice %21 {offsets = [6, 0], sizes = [1, 128], strides = [1, 1]} : vector<12x128xf32> to vector<1x128xf32>
    %29 = vector.extract_strided_slice %21 {offsets = [7, 0], sizes = [1, 128], strides = [1, 1]} : vector<12x128xf32> to vector<1x128xf32>
    %30 = vector.extract_strided_slice %21 {offsets = [8, 0], sizes = [1, 128], strides = [1, 1]} : vector<12x128xf32> to vector<1x128xf32>
    %31 = vector.extract_strided_slice %21 {offsets = [9, 0], sizes = [1, 128], strides = [1, 1]} : vector<12x128xf32> to vector<1x128xf32>
    %32 = vector.extract_strided_slice %21 {offsets = [10, 0], sizes = [1, 128], strides = [1, 1]} : vector<12x128xf32> to vector<1x128xf32>
    %33 = vector.extract_strided_slice %21 {offsets = [11, 0], sizes = [1, 128], strides = [1, 1]} : vector<12x128xf32> to vector<1x128xf32>
    %34 = vector.extract_strided_slice %18 {offsets = [0, 128], sizes = [8, 128], strides = [1, 1]} : vector<8x384xf32> to vector<8x128xf32>
    %35 = vector.extract_strided_slice %20 {offsets = [0, 128], sizes = [8, 128], strides = [1, 1]} : vector<8x384xf32> to vector<8x128xf32>
    %36 = arith.addf %34, %35 : vector<8x128xf32>
    %37 = vector.broadcast %24 : vector<1x128xf32> to vector<8x128xf32>
    %38 = arith.addf %36, %37 : vector<8x128xf32>
    %39 = arith.negf %38 : vector<8x128xf32>
    %40 = math.exp %39 : vector<8x128xf32>
    %cst_13 = arith.constant 1.000000e+00 : f32
    %41 = vector.broadcast %cst_13 : f32 to vector<8x128xf32>
    %42 = arith.addf %41, %40 : vector<8x128xf32>
    %43 = arith.divf %41, %42 : vector<8x128xf32>
    %44 = vector.extract_strided_slice %18 {offsets = [0, 256], sizes = [8, 128], strides = [1, 1]} : vector<8x384xf32> to vector<8x128xf32>
    %45 = vector.extract_strided_slice %20 {offsets = [0, 256], sizes = [8, 128], strides = [1, 1]} : vector<8x384xf32> to vector<8x128xf32>
    %46 = arith.addf %44, %45 : vector<8x128xf32>
    %47 = vector.broadcast %25 : vector<1x128xf32> to vector<8x128xf32>
    %48 = arith.addf %46, %47 : vector<8x128xf32>
    %49 = arith.negf %48 : vector<8x128xf32>
    %50 = math.exp %49 : vector<8x128xf32>
    %cst_14 = arith.constant 1.000000e+00 : f32
    %51 = vector.broadcast %cst_14 : f32 to vector<8x128xf32>
    %52 = arith.addf %51, %50 : vector<8x128xf32>
    %53 = arith.divf %51, %52 : vector<8x128xf32>
    %54 = vector.extract_strided_slice %18 {offsets = [0, 0], sizes = [8, 128], strides = [1, 1]} : vector<8x384xf32> to vector<8x128xf32>
    %55 = vector.broadcast %22 : vector<1x128xf32> to vector<8x128xf32>
    %56 = arith.addf %54, %55 : vector<8x128xf32>
    %cst_15 = arith.constant dense<0.000000e+00> : vector<8xf32>
    %57 = vector.multi_reduction <add>, %56, %cst_15 [1] : vector<8x128xf32> to vector<8xf32>
    %58 = vector.shape_cast %57 : vector<8xf32> to vector<8x1xf32>
    %cst_16 = arith.constant 3.125000e-02 : f32
    %59 = vector.broadcast %cst_16 : f32 to vector<8x1xf32>
    %60 = arith.mulf %58, %59 : vector<8x1xf32>
    %61 = vector.broadcast %60 : vector<8x1xf32> to vector<8x128xf32>
    %62 = arith.subf %56, %61 : vector<8x128xf32>
    %63 = vector.broadcast %33 : vector<1x128xf32> to vector<8x128xf32>
    %64 = arith.mulf %62, %63 : vector<8x128xf32>
    %65 = arith.mulf %64, %64 : vector<8x128xf32>
    %cst_17 = arith.constant dense<0.000000e+00> : vector<8xf32>
    %66 = vector.multi_reduction <add>, %65, %cst_17 [1] : vector<8x128xf32> to vector<8xf32>
    %67 = vector.shape_cast %66 : vector<8xf32> to vector<8x1xf32>
    %cst_18 = arith.constant 3.125000e-02 : f32
    %68 = vector.broadcast %cst_18 : f32 to vector<8x1xf32>
    %69 = arith.mulf %67, %68 : vector<8x1xf32>
    %cst_19 = arith.constant 9.99999974E-6 : f32
    %70 = vector.broadcast %cst_19 : f32 to vector<8x1xf32>
    %71 = arith.addf %69, %70 : vector<8x1xf32>
    %72 = math.rsqrt %71 : vector<8x1xf32>
    %73 = vector.broadcast %72 : vector<8x1xf32> to vector<8x128xf32>
    %74 = arith.mulf %64, %73 : vector<8x128xf32>
    %75 = vector.broadcast %26 : vector<1x128xf32> to vector<8x128xf32>
    %76 = arith.mulf %74, %75 : vector<8x128xf32>
    %77 = vector.broadcast %27 : vector<1x128xf32> to vector<8x128xf32>
    %78 = arith.addf %76, %77 : vector<8x128xf32>
    %cst_20 = arith.constant 5.000000e-01 : f32
    %79 = vector.broadcast %cst_20 : f32 to vector<8x128xf32>
    %80 = arith.mulf %79, %78 : vector<8x128xf32>
    %cst_21 = arith.constant 0.707106769 : f32
    %81 = vector.broadcast %cst_21 : f32 to vector<8x128xf32>
    %82 = arith.mulf %78, %81 : vector<8x128xf32>
    %83 = math.erf %82 : vector<8x128xf32>
    %cst_22 = arith.constant 1.000000e+00 : f32
    %84 = vector.broadcast %cst_22 : f32 to vector<8x128xf32>
    %85 = arith.addf %84, %83 : vector<8x128xf32>
    %86 = arith.mulf %80, %85 : vector<8x128xf32>
    %87 = vector.extract_strided_slice %20 {offsets = [0, 0], sizes = [8, 128], strides = [1, 1]} : vector<8x384xf32> to vector<8x128xf32>
    %88 = vector.broadcast %23 : vector<1x128xf32> to vector<8x128xf32>
    %89 = arith.addf %87, %88 : vector<8x128xf32>
    %cst_23 = arith.constant dense<0.000000e+00> : vector<8xf32>
    %90 = vector.multi_reduction <add>, %89, %cst_23 [1] : vector<8x128xf32> to vector<8xf32>
    %91 = vector.shape_cast %90 : vector<8xf32> to vector<8x1xf32>
    %cst_24 = arith.constant 3.125000e-02 : f32
    %92 = vector.broadcast %cst_24 : f32 to vector<8x1xf32>
    %93 = arith.mulf %91, %92 : vector<8x1xf32>
    %94 = vector.broadcast %93 : vector<8x1xf32> to vector<8x128xf32>
    %95 = arith.subf %89, %94 : vector<8x128xf32>
    %96 = vector.broadcast %33 : vector<1x128xf32> to vector<8x128xf32>
    %97 = arith.mulf %95, %96 : vector<8x128xf32>
    %98 = arith.mulf %97, %97 : vector<8x128xf32>
    %cst_25 = arith.constant dense<0.000000e+00> : vector<8xf32>
    %99 = vector.multi_reduction <add>, %98, %cst_25 [1] : vector<8x128xf32> to vector<8xf32>
    %100 = vector.shape_cast %99 : vector<8xf32> to vector<8x1xf32>
    %cst_26 = arith.constant 3.125000e-02 : f32
    %101 = vector.broadcast %cst_26 : f32 to vector<8x1xf32>
    %102 = arith.mulf %100, %101 : vector<8x1xf32>
    %cst_27 = arith.constant 9.99999974E-6 : f32
    %103 = vector.broadcast %cst_27 : f32 to vector<8x1xf32>
    %104 = arith.addf %102, %103 : vector<8x1xf32>
    %105 = math.rsqrt %104 : vector<8x1xf32>
    %106 = vector.broadcast %105 : vector<8x1xf32> to vector<8x128xf32>
    %107 = arith.mulf %97, %106 : vector<8x128xf32>
    %108 = vector.broadcast %28 : vector<1x128xf32> to vector<8x128xf32>
    %109 = arith.mulf %107, %108 : vector<8x128xf32>
    %110 = vector.broadcast %29 : vector<1x128xf32> to vector<8x128xf32>
    %111 = arith.addf %109, %110 : vector<8x128xf32>
    %cst_28 = arith.constant 5.000000e-01 : f32
    %112 = vector.broadcast %cst_28 : f32 to vector<8x128xf32>
    %113 = arith.mulf %112, %111 : vector<8x128xf32>
    %cst_29 = arith.constant 0.707106769 : f32
    %114 = vector.broadcast %cst_29 : f32 to vector<8x128xf32>
    %115 = arith.mulf %111, %114 : vector<8x128xf32>
    %116 = math.erf %115 : vector<8x128xf32>
    %cst_30 = arith.constant 1.000000e+00 : f32
    %117 = vector.broadcast %cst_30 : f32 to vector<8x128xf32>
    %118 = arith.addf %117, %116 : vector<8x128xf32>
    %119 = arith.mulf %113, %118 : vector<8x128xf32>
    %120 = arith.mulf %86, %43 : vector<8x128xf32>
    %121 = arith.mulf %119, %53 : vector<8x128xf32>
    %122 = arith.addf %120, %121 : vector<8x128xf32>
    %c0_31 = arith.constant 0 : index
    %c0_32 = arith.constant 0 : index
    %123 = vector.load %arg6[%c0_31, %c0_32] : memref<128x128xf32, #tpu.memory_space<vmem>>, vector<128x128xf32>
    %cst_33 = arith.constant dense<0.000000e+00> : vector<8x128xf32>
    %124 = tpu.matmul %122, %123, %cst_33 {dimension_numbers = #tpu.dot_dimension_numbers<[1], [0], [0], [1], [0, 0, 1, 1], [], []>} : vector<8x128xf32>, vector<128x128xf32>, vector<8x128xf32> -> vector<8x128xf32>
    %125 = vector.broadcast %30 : vector<1x128xf32> to vector<8x128xf32>
    %126 = arith.addf %124, %125 : vector<8x128xf32>
    %cst_34 = arith.constant dense<0.000000e+00> : vector<8xf32>
    %127 = vector.multi_reduction <add>, %126, %cst_34 [1] : vector<8x128xf32> to vector<8xf32>
    %128 = vector.shape_cast %127 : vector<8xf32> to vector<8x1xf32>
    %cst_35 = arith.constant 3.125000e-02 : f32
    %129 = vector.broadcast %cst_35 : f32 to vector<8x1xf32>
    %130 = arith.mulf %128, %129 : vector<8x1xf32>
    %131 = vector.broadcast %130 : vector<8x1xf32> to vector<8x128xf32>
    %132 = arith.subf %126, %131 : vector<8x128xf32>
    %133 = vector.broadcast %33 : vector<1x128xf32> to vector<8x128xf32>
    %134 = arith.mulf %132, %133 : vector<8x128xf32>
    %135 = arith.mulf %134, %134 : vector<8x128xf32>
    %cst_36 = arith.constant dense<0.000000e+00> : vector<8xf32>
    %136 = vector.multi_reduction <add>, %135, %cst_36 [1] : vector<8x128xf32> to vector<8xf32>
    %137 = vector.shape_cast %136 : vector<8xf32> to vector<8x1xf32>
    %cst_37 = arith.constant 3.125000e-02 : f32
    %138 = vector.broadcast %cst_37 : f32 to vector<8x1xf32>
    %139 = arith.mulf %137, %138 : vector<8x1xf32>
    %cst_38 = arith.constant 9.99999974E-6 : f32
    %140 = vector.broadcast %cst_38 : f32 to vector<8x1xf32>
    %141 = arith.addf %139, %140 : vector<8x1xf32>
    %142 = math.rsqrt %141 : vector<8x1xf32>
    %143 = vector.broadcast %142 : vector<8x1xf32> to vector<8x128xf32>
    %144 = arith.mulf %134, %143 : vector<8x128xf32>
    %145 = vector.broadcast %31 : vector<1x128xf32> to vector<8x128xf32>
    %146 = arith.mulf %144, %145 : vector<8x128xf32>
    %147 = vector.broadcast %32 : vector<1x128xf32> to vector<8x128xf32>
    %148 = arith.addf %146, %147 : vector<8x128xf32>
    %c0_39 = arith.constant 0 : index
    %c0_40 = arith.constant 0 : index
    %149 = vector.load %arg8[%c0_39, %c0_40] : memref<8x128xf32, #tpu.memory_space<vmem>>, vector<8x128xf32>
    tpu.vector_store %arg8[%c0_39, %c0_40], %148 {strides = array<i32>} : memref<8x128xf32, #tpu.memory_space<vmem>>, vector<8x128xf32>,
    return
  }
  func.func @transform_0(%arg0: i32, %arg1: memref<1xi32, #tpu.memory_space<smem>>) -> (i32, i32) {
    %c0_i32 = arith.constant 0 : i32
    %c0_i32_0 = arith.constant 0 : i32
    return %arg0, %c0_i32 : i32, i32
  }
  func.func @transform_1(%arg0: i32, %arg1: memref<1xi32, #tpu.memory_space<smem>>) -> (i32, i32) {
    %c0_i32 = arith.constant 0 : i32
    %c0_i32_0 = arith.constant 0 : i32
    return %arg0, %c0_i32 : i32, i32
  }
  func.func @transform_2(%arg0: i32, %arg1: memref<1xi32, #tpu.memory_space<smem>>) -> (i32, i32) {
    %c0_i32 = arith.constant 0 : i32
    %c0_i32_0 = arith.constant 0 : i32
    %c0_i32_1 = arith.constant 0 : i32
    return %c0_i32, %c0_i32_0 : i32, i32
  }
  func.func @transform_3(%arg0: i32, %arg1: memref<1xi32, #tpu.memory_space<smem>>) -> (i32, i32) {
    %c0_i32 = arith.constant 0 : i32
    %c0_i32_0 = arith.constant 0 : i32
    %c0_i32_1 = arith.constant 0 : i32
    return %c0_i32, %c0_i32_0 : i32, i32
  }
  func.func @transform_4(%arg0: i32, %arg1: memref<1xi32, #tpu.memory_space<smem>>) -> (i32, i32) {
    %c0_i32 = arith.constant 0 : i32
    %c0_i32_0 = arith.constant 0 : i32
    %c0_i32_1 = arith.constant 0 : i32
    return %c0_i32, %c0_i32_0 : i32, i32
  }
  func.func @transform_5(%arg0: i32, %arg1: memref<1xi32, #tpu.memory_space<smem>>) -> (i32, i32) {
    %c0_i32 = arith.constant 0 : i32
    %c0_i32_0 = arith.constant 0 : i32
    %c0_i32_1 = arith.constant 0 : i32
    return %c0_i32, %c0_i32_0 : i32, i32
  }
  func.func @transform_6(%arg0: i32, %arg1: memref<1xi32, #tpu.memory_space<smem>>) -> (i32, i32) {
    %c0_i32 = arith.constant 0 : i32
    %c0_i32_0 = arith.constant 0 : i32
    return %arg0, %c0_i32 : i32, i32
  }
}

</mosaic_0001>

<llo_original>
// kernel: forward.1
$region0: #{forward.1}
  #allocation0 [shape = 'u32[]', space=smem, size = 0x4, offset = 0x4, fixed_abs, tag = 'smem constant byte address 0x4 - core index']
  #allocation1 [shape = 'u32[144,128]{1,0:T(1,128)}', space=vmem, size = 0x12000, scoped, tag = 'internal scratch']
  #allocation2 [shape = 's32[1]{0}', space=sflag, size = 0x4, scoped, tag = 'scoped memory for forward.1']
  #allocation3 [shape = 's32[1]{0:T(128)S(6)}', space=smem, size = 0x200, scoped, tag = 'prefetched SMEM operand 0']
  %s0 = inlined_call_operand.<no memory space> [shape: s32[1], index: 0, kind: input, shape index: {}]
  %s1 = inlined_call_operand.hbm [shape: f32[8,32], index: 1, kind: input, shape index: {}]
  %s2 = inlined_call_operand.hbm [shape: f32[8,48], index: 2, kind: input, shape index: {}]
  %s3 = inlined_call_operand.hbm [shape: f32[32,384], index: 3, kind: input, shape index: {}]
  %s4 = inlined_call_operand.hbm [shape: f32[48,384], index: 4, kind: input, shape index: {}]
  %s5 = inlined_call_operand.hbm [shape: f32[128,128], index: 5, kind: input, shape index: {}]
  %s6 = inlined_call_operand.vmem [shape: f32[12,128], index: 6, kind: input, shape index: {}]
  %s7 = inlined_call_operand.hbm [shape: f32[8,128], index: 7, kind: output, shape index: {}]
  %s8 = sld [smem:[#allocation0]]
  $region54: #{forward.1} parent=0
    _
  %s10 = ssub.s32 1, %s8
  %s11 = scalar_select 0, %s10, %s8
  %12 = sst [smem:[#allocation3]] %s0
  $region1: #{forward.1} parent=0
    #allocation4 [shape = 'u8[4096]{0}', space=vmem, size = 0x1000, scoped, tag = 'input window, operand 1, single buffered']
    #allocation5 [shape = 's32[1]{0}', space=sflag, size = 0x4, scoped, tag = 'scoped memory for forward.1']
    #allocation6 [shape = 's32[1]{0}', space=sflag, size = 0x4, scoped, tag = 'scoped memory for forward.1']
    #allocation7 [shape = 'u8[4096]{0}', space=vmem, size = 0x1000, scoped, tag = 'input window, operand 2, single buffered']
    #allocation8 [shape = 's32[1]{0}', space=sflag, size = 0x4, scoped, tag = 'scoped memory for forward.1']
    #allocation9 [shape = 'u8[49152]{0}', space=vmem, size = 0xc000, scoped, tag = 'input window, operand 3, single buffered']
    #allocation10 [shape = 'u8[73728]{0}', space=vmem, size = 0x12000, scoped, tag = 'input window, operand 4, single buffered']
    #allocation11 [shape = 's32[1]{0}', space=sflag, size = 0x4, scoped, tag = 'scoped memory for forward.1']
    #allocation12 [shape = 'u8[65536]{0}', space=vmem, size = 0x10000, scoped, tag = 'input window, operand 5, single buffered']
    #allocation13 [shape = 'u8[4096]{0}', space=vmem, size = 0x1000, scoped, tag = 'output window, operand 0, single buffered']
    %13 = vsyncpa [#allocation5], 0
    %14 = vsyncpa [#allocation8], 0
    %15 = vsyncpa [#allocation11], 0
    %16 = vsyncpa [#allocation6], 0
    // Predicated region
    $region2: #{forward.1} parent=1 // pred_check
      _
    $region3: #{forward.1} parent=1 // pred_check_branch
      %18 = sbr.rel (0) target = $region5
    $region4: #{forward.1} parent=1 // pred_region
      %s20 = ssub.s32 128, 128
      %21 = vsyncadd [#allocation5], %s20
      %s23 = sshll.u32 [#allocation4], 4
      %s24 = int_to_ptr.vmem [resolvable:$true] %s23
      %26 = dma.hbm_to_vmem [thread:$0]  %s1, 128, %s24, [#allocation5]
    $region5: #{forward.1} parent=1 // pred_fallthru
      _
    // Predicated region
    $region6: #{forward.1} parent=1 // pred_check
      _
    $region7: #{forward.1} parent=1 // pred_check_branch
      %28 = sbr.rel (0) target = $region9
    $region8: #{forward.1} parent=1 // pred_region
      %s30 = ssub.s32 128, 128
      %31 = vsyncadd [#allocation8], %s30
      %s33 = sshll.u32 [#allocation7], 4
      %s34 = int_to_ptr.vmem [resolvable:$true] %s33
      %36 = dma.hbm_to_vmem [thread:$0]  %s2, 128, %s34, [#allocation8]
    $region9: #{forward.1} parent=1 // pred_fallthru
      _
    // Predicated region
    $region10: #{forward.1} parent=1 // pred_check
      _
    $region11: #{forward.1} parent=1 // pred_check_branch
      %38 = sbr.rel (0) target = $region13
    $region12: #{forward.1} parent=1 // pred_region
      %s40 = ssub.s32 1536, 1536
      %41 = vsyncadd [#allocation8], %s40
      %s42 = sshll.u32 [#allocation9], 4
      %s43 = int_to_ptr.vmem [resolvable:$true] %s42
      %48 = dma.hbm_to_vmem [thread:$0]  %s3, 1536, %s43, [#allocation8], 384, 384, 24
    $region13: #{forward.1} parent=1 // pred_fallthru
      _
    // Predicated region
    $region14: #{forward.1} parent=1 // pred_check
      _
    $region15: #{forward.1} parent=1 // pred_check_branch
      %50 = sbr.rel (0) target = $region17
    $region16: #{forward.1} parent=1 // pred_region
      %s52 = ssub.s32 2304, 2304
      %53 = vsyncadd [#allocation11], %s52
      %s54 = sshll.u32 [#allocation10], 4
      %s55 = int_to_ptr.vmem [resolvable:$true] %s54
      %60 = dma.hbm_to_vmem [thread:$0]  %s4, 2304, %s55, [#allocation11], 384, 384, 24
    $region17: #{forward.1} parent=1 // pred_fallthru
      _
    // Predicated region
    $region18: #{forward.1} parent=1 // pred_check
      _
    $region19: #{forward.1} parent=1 // pred_check_branch
      %62 = sbr.rel (0) target = $region21
    $region20: #{forward.1} parent=1 // pred_region
      %s64 = ssub.s32 2048, 2048
      %65 = vsyncadd [#allocation11], %s64
      %s66 = sshll.u32 [#allocation12], 4
      %s67 = int_to_ptr.vmem [resolvable:$true] %s66
      %72 = dma.hbm_to_vmem [thread:$0]  %s5, 2048, %s67, [#allocation11], 128, 128, 8
    $region21: #{forward.1} parent=1 // pred_fallthru
      _
    // Predicated region
    $region22: #{forward.1} parent=1 // pred_check
      _
    $region23: #{forward.1} parent=1 // pred_check_branch
      %74 = sbr.rel (0) target = $region25
    $region24: #{forward.1} parent=1 // pred_region
      _
    $region25: #{forward.1} parent=1 // pred_fallthru
      _
    // Predicated region
    $region26: #{forward.1} parent=1 // pred_check
      _
    $region27: #{forward.1} parent=1 // pred_check_branch
      %76 = sbr.rel (0) target = $region29
    $region28: #{forward.1} parent=1 // pred_region
      %77 = dma.done [#allocation5], 128
    $region29: #{forward.1} parent=1 // pred_fallthru
      _
    // Predicated region
    $region30: #{forward.1} parent=1 // pred_check
      _
    $region31: #{forward.1} parent=1 // pred_check_branch
      %79 = sbr.rel (0) target = $region33
    $region32: #{forward.1} parent=1 // pred_region
      %80 = dma.done [#allocation8], 128
    $region33: #{forward.1} parent=1 // pred_fallthru
      _
    // Predicated region
    $region34: #{forward.1} parent=1 // pred_check
      _
    $region35: #{forward.1} parent=1 // pred_check_branch
      %82 = sbr.rel (0) target = $region37
    $region36: #{forward.1} parent=1 // pred_region
      %83 = dma.done [#allocation8], 1536
    $region37: #{forward.1} parent=1 // pred_fallthru
      _
    // Predicated region
    $region38: #{forward.1} parent=1 // pred_check
      _
    $region39: #{forward.1} parent=1 // pred_check_branch
      %85 = sbr.rel (0) target = $region41
    $region40: #{forward.1} parent=1 // pred_region
      %86 = dma.done [#allocation11], 2304
    $region41: #{forward.1} parent=1 // pred_fallthru
      _
    // Predicated region
    $region42: #{forward.1} parent=1 // pred_check
      _
    $region43: #{forward.1} parent=1 // pred_check_branch
      %88 = sbr.rel (0) target = $region45
    $region44: #{forward.1} parent=1 // pred_region
      %89 = dma.done [#allocation11], 2048
    $region45: #{forward.1} parent=1 // pred_fallthru
      _
    %s90 = smul.u32 0, 8
    %v91 = vlaneseq
    %v92 = vshrl.u32 %v91, 7
    %v93 = vstv %s90
    %v94 = vadd.s32 %v93, %v92
    %s95 = sld [smem:[#allocation3]]
    %v96 = vstv %s95
    %vm97 = vcmp.lt.s32.totalorder %v94, %v96
    %v98 = vld [vmem:[#allocation4] sm:$0xff]
    %v99 = vsel %vm97, 1, 0
    %vm100 = vcmp.eq.s32.totalorder %v99, 1
    %v101 = vsel %vm100, %v98, 0.0
    %v102 = vld [vmem:[#allocation7] sm:$0xff]
    %v103 = vsel %vm100, %v102, 0.0
    %v104 = vld [vmem:[#allocation9] sm:$0xff]
    %v105 = vld [vmem:[#allocation9 + $0x8] sm:$0xff]
    %v106 = vld [vmem:[#allocation9 + $0x10] sm:$0xff]
    %v107 = vld [vmem:[#allocation9 + $0x18] sm:$0xff]
    %v108 = vld [vmem:[#allocation9 + $0x20] sm:$0xff]
    %v109 = vld [vmem:[#allocation9 + $0x28] sm:$0xff]
    %v110 = vld [vmem:[#allocation9 + $0x30] sm:$0xff]
    %v111 = vld [vmem:[#allocation9 + $0x38] sm:$0xff]
    %v112 = vld [vmem:[#allocation9 + $0x40] sm:$0xff]
    %v113 = vld [vmem:[#allocation9 + $0x48] sm:$0xff]
    %v114 = vld [vmem:[#allocation9 + $0x50] sm:$0xff]
    %v115 = vld [vmem:[#allocation9 + $0x58] sm:$0xff]
    %vm116 = vcmask 261120
    %v118 = vsel %vm116, %v101, 0
    %120 = vmatprep.subr.mxu0 %v105
    %121 = vmatpush1.msra.mxu0 %v104
    %122 = vmatprep.subr.mxu0 %v108
    %123 = vmatpush1.msra.mxu0 %v107
    %124 = vmatprep.subr.mxu0 %v111
    %125 = vmatpush1.msra.mxu0 %v110
    %126 = vmatprep.subr.mxu0 %v114
    %127 = vmatpush1.msra.mxu0 %v113
    %128 = vmatprep.subr.mxu0 0.0
    %129 = vmatpush1.msra.mxu0 0.0
    %130 = vmatprep.subr.mxu0 0.0
    %131 = vmatpush1.msra.mxu0 0.0
    %132 = vmatprep.subr.mxu0 0.0
    %133 = vmatpush1.msra.mxu0 0.0
    %134 = vmatprep.subr.mxu0 0.0
    %135 = vmatpush1.msra.mxu0 0.0
    %136 = vmatprep.subr.mxu0 0.0
    %137 = vmatpush1.msra.mxu0 0.0
    %138 = vmatprep.subr.mxu0 0.0
    %139 = vmatpush1.msra.mxu0 0.0
    %140 = vmatprep.subr.mxu0 0.0
    %141 = vmatpush1.msra.mxu0 0.0
    %142 = vmatprep.subr.mxu0 0.0
    %143 = vmatpush1.msra.mxu0 0.0
    %144 = vmatprep.subr.mxu0 0.0
    %145 = vmatpush1.msra.mxu0 0.0
    %146 = vmatprep.subr.mxu0 0.0
    %147 = vmatpush1.msra.mxu0 0.0
    %148 = vmatprep.subr.mxu0 0.0
    %149 = vmatpush1.msra.mxu0 0.0
    %150 = vmatprep.subr.mxu0 0.0
    %151 = vmatpush1.msra.mxu0 0.0
    %152 = vmatprep.subr.mxu0 0.0
    %153 = vmatpush1.msra.mxu0 0.0
    %154 = vmatprep.subr.mxu0 0.0
    %155 = vmatpush1.msra.mxu0 0.0
    %156 = vmatprep.subr.mxu0 0.0
    %157 = vmatpush1.msra.mxu0 0.0
    %158 = vmatprep.subr.mxu0 0.0
    %159 = vmatpush1.msra.mxu0 0.0
    %160 = vmatprep.subr.mxu0 0.0
    %161 = vmatpush1.msra.mxu0 0.0
    %162 = vmatprep.subr.mxu0 0.0
    %163 = vmatpush1.msra.mxu0 0.0
    %164 = vmatprep.subr.mxu0 0.0
    %165 = vmatpush1.msra.mxu0 0.0
    %166 = vmatprep.subr.mxu0 0.0
    %167 = vmatpush1.msra.mxu0 0.0
    %168 = vmatprep.subr.mxu0 0.0
    %169 = vmatpush1.msra.mxu0 0.0
    %170 = vmatprep.subr.mxu0 0.0
    %171 = vmatpush1.msra.mxu0 0.0
    %172 = vmatprep.subr.mxu0 0.0
    %173 = vmatpush1.msra.mxu0 0.0
    %174 = vmatprep.subr.mxu0 0.0
    %175 = vmatpush1.msra.mxu0 0.0
    %176 = vmatprep.subr.mxu0 0.0
    %177 = vmatpush1.msra.mxu0 0.0
    %178 = vmatprep.subr.mxu0 0.0
    %179 = vmatpush1.msra.mxu0 0.0
    %180 = vmatprep.subr.mxu0 0.0
    %181 = vmatpush1.msra.mxu0 0.0
    %182 = vmatprep.subr.mxu0 0.0
    %183 = vmatpush1.msra.mxu0 0.0
    %184 = vmatprep.mubr.f32.mxu0 0.0
    %185 = vmatmul.mubr.f32.gmra.mrb[0].mxu0 %v118
    %v186 = vpop.f32.mrb[0].mxu0
    %v187 = vadd.f32 0.0, %v186
    %v188 = vpop.f32.mrb[0].mxu0
    %v189 = vadd.f32 0.0, %v188
    %190 = vdwg.mxu0
    %191 = vmatprep.subr.mxu0 0.0
    %192 = vmatpush1.msra.mxu0 %v106
    %193 = vmatprep.subr.mxu0 0.0
    %194 = vmatpush1.msra.mxu0 %v109
    %195 = vmatprep.subr.mxu0 0.0
    %196 = vmatpush1.msra.mxu0 %v112
    %197 = vmatprep.subr.mxu0 0.0
    %198 = vmatpush1.msra.mxu0 %v115
    %199 = vmatprep.subr.mxu0 0.0
    %200 = vmatpush1.msra.mxu0 0.0
    %201 = vmatprep.subr.mxu0 0.0
    %202 = vmatpush1.msra.mxu0 0.0
    %203 = vmatprep.subr.mxu0 0.0
    %204 = vmatpush1.msra.mxu0 0.0
    %205 = vmatprep.subr.mxu0 0.0
    %206 = vmatpush1.msra.mxu0 0.0
    %207 = vmatprep.subr.mxu0 0.0
    %208 = vmatpush1.msra.mxu0 0.0
    %209 = vmatprep.subr.mxu0 0.0
    %210 = vmatpush1.msra.mxu0 0.0
    %211 = vmatprep.subr.mxu0 0.0
    %212 = vmatpush1.msra.mxu0 0.0
    %213 = vmatprep.subr.mxu0 0.0
    %214 = vmatpush1.msra.mxu0 0.0
    %215 = vmatprep.subr.mxu0 0.0
    %216 = vmatpush1.msra.mxu0 0.0
    %217 = vmatprep.subr.mxu0 0.0
    %218 = vmatpush1.msra.mxu0 0.0
    %219 = vmatprep.subr.mxu0 0.0
    %220 = vmatpush1.msra.mxu0 0.0
    %221 = vmatprep.subr.mxu0 0.0
    %222 = vmatpush1.msra.mxu0 0.0
    %223 = vmatprep.subr.mxu0 0.0
    %224 = vmatpush1.msra.mxu0 0.0
    %225 = vmatprep.subr.mxu0 0.0
    %226 = vmatpush1.msra.mxu0 0.0
    %227 = vmatprep.subr.mxu0 0.0
    %228 = vmatpush1.msra.mxu0 0.0
    %229 = vmatprep.subr.mxu0 0.0
    %230 = vmatpush1.msra.mxu0 0.0
    %231 = vmatprep.subr.mxu0 0.0
    %232 = vmatpush1.msra.mxu0 0.0
    %233 = vmatprep.subr.mxu0 0.0
    %234 = vmatpush1.msra.mxu0 0.0
    %235 = vmatprep.subr.mxu0 0.0
    %236 = vmatpush1.msra.mxu0 0.0
    %237 = vmatprep.subr.mxu0 0.0
    %238 = vmatpush1.msra.mxu0 0.0
    %239 = vmatprep.subr.mxu0 0.0
    %240 = vmatpush1.msra.mxu0 0.0
    %241 = vmatprep.subr.mxu0 0.0
    %242 = vmatpush1.msra.mxu0 0.0
    %243 = vmatprep.subr.mxu0 0.0
    %244 = vmatpush1.msra.mxu0 0.0
    %245 = vmatprep.subr.mxu0 0.0
    %246 = vmatpush1.msra.mxu0 0.0
    %247 = vmatprep.subr.mxu0 0.0
    %248 = vmatpush1.msra.mxu0 0.0
    %249 = vmatprep.subr.mxu0 0.0
    %250 = vmatpush1.msra.mxu0 0.0
    %251 = vmatprep.subr.mxu0 0.0
    %252 = vmatpush1.msra.mxu0 0.0
    %253 = vmatprep.subr.mxu0 0.0
    %254 = vmatpush1.msra.mxu0 0.0
    %255 = vmatprep.mubr.f32.mxu0 0.0
    %256 = vmatmul.mubr.f32.gmra.mrb[0].mxu0 %v118
    %v257 = vpop.f32.mrb[0].mxu0
    %v258 = vadd.f32 0.0, %v257
    %v259 = vpop.f32.mrb[0].mxu0
    %260 = vdwg.mxu0
    %v261 = vld [vmem:[#allocation10] sm:$0xff]
    %v262 = vld [vmem:[#allocation10 + $0x8] sm:$0xff]
    %v263 = vld [vmem:[#allocation10 + $0x10] sm:$0xff]
    %v264 = vld [vmem:[#allocation10 + $0x18] sm:$0xff]
    %v265 = vld [vmem:[#allocation10 + $0x20] sm:$0xff]
    %v266 = vld [vmem:[#allocation10 + $0x28] sm:$0xff]
    %v267 = vld [vmem:[#allocation10 + $0x30] sm:$0xff]
    %v268 = vld [vmem:[#allocation10 + $0x38] sm:$0xff]
    %v269 = vld [vmem:[#allocation10 + $0x40] sm:$0xff]
    %v270 = vld [vmem:[#allocation10 + $0x48] sm:$0xff]
    %v271 = vld [vmem:[#allocation10 + $0x50] sm:$0xff]
    %v272 = vld [vmem:[#allocation10 + $0x58] sm:$0xff]
    %v273 = vld [vmem:[#allocation10 + $0x60] sm:$0xff]
    %v274 = vld [vmem:[#allocation10 + $0x68] sm:$0xff]
    %v275 = vld [vmem:[#allocation10 + $0x70] sm:$0xff]
    %v276 = vld [vmem:[#allocation10 + $0x78] sm:$0xff]
    %v277 = vld [vmem:[#allocation10 + $0x80] sm:$0xff]
    %v278 = vld [vmem:[#allocation10 + $0x88] sm:$0xff]
    %vm279 = vcmask 392192
    %v281 = vsel %vm279, %v103, 0
    %283 = vmatprep.subr.mxu0 %v262
    %284 = vmatpush1.msra.mxu0 %v261
    %285 = vmatprep.subr.mxu0 %v265
    %286 = vmatpush1.msra.mxu0 %v264
    %287 = vmatprep.subr.mxu0 %v268
    %288 = vmatpush1.msra.mxu0 %v267
    %289 = vmatprep.subr.mxu0 %v271
    %290 = vmatpush1.msra.mxu0 %v270
    %291 = vmatprep.subr.mxu0 %v274
    %292 = vmatpush1.msra.mxu0 %v273
    %293 = vmatprep.subr.mxu0 %v277
    %294 = vmatpush1.msra.mxu0 %v276
    %295 = vmatprep.subr.mxu0 0.0
    %296 = vmatpush1.msra.mxu0 0.0
    %297 = vmatprep.subr.mxu0 0.0
    %298 = vmatpush1.msra.mxu0 0.0
    %299 = vmatprep.subr.mxu0 0.0
    %300 = vmatpush1.msra.mxu0 0.0
    %301 = vmatprep.subr.mxu0 0.0
    %302 = vmatpush1.msra.mxu0 0.0
    %303 = vmatprep.subr.mxu0 0.0
    %304 = vmatpush1.msra.mxu0 0.0
    %305 = vmatprep.subr.mxu0 0.0
    %306 = vmatpush1.msra.mxu0 0.0
    %307 = vmatprep.subr.mxu0 0.0
    %308 = vmatpush1.msra.mxu0 0.0
    %309 = vmatprep.subr.mxu0 0.0
    %310 = vmatpush1.msra.mxu0 0.0
    %311 = vmatprep.subr.mxu0 0.0
    %312 = vmatpush1.msra.mxu0 0.0
    %313 = vmatprep.subr.mxu0 0.0
    %314 = vmatpush1.msra.mxu0 0.0
    %315 = vmatprep.subr.mxu0 0.0
    %316 = vmatpush1.msra.mxu0 0.0
    %317 = vmatprep.subr.mxu0 0.0
    %318 = vmatpush1.msra.mxu0 0.0
    %319 = vmatprep.subr.mxu0 0.0
    %320 = vmatpush1.msra.mxu0 0.0
    %321 = vmatprep.subr.mxu0 0.0
    %322 = vmatpush1.msra.mxu0 0.0
    %323 = vmatprep.subr.mxu0 0.0
    %324 = vmatpush1.msra.mxu0 0.0
    %325 = vmatprep.subr.mxu0 0.0
    %326 = vmatpush1.msra.mxu0 0.0
    %327 = vmatprep.subr.mxu0 0.0
    %328 = vmatpush1.msra.mxu0 0.0
    %329 = vmatprep.subr.mxu0 0.0
    %330 = vmatpush1.msra.mxu0 0.0
    %331 = vmatprep.subr.mxu0 0.0
    %332 = vmatpush1.msra.mxu0 0.0
    %333 = vmatprep.subr.mxu0 0.0
    %334 = vmatpush1.msra.mxu0 0.0
    %335 = vmatprep.subr.mxu0 0.0
    %336 = vmatpush1.msra.mxu0 0.0
    %337 = vmatprep.subr.mxu0 0.0
    %338 = vmatpush1.msra.mxu0 0.0
    %339 = vmatprep.subr.mxu0 0.0
    %340 = vmatpush1.msra.mxu0 0.0
    %341 = vmatprep.subr.mxu0 0.0
    %342 = vmatpush1.msra.mxu0 0.0
    %343 = vmatprep.subr.mxu0 0.0
    %344 = vmatpush1.msra.mxu0 0.0
    %345 = vmatprep.subr.mxu0 0.0
    %346 = vmatpush1.msra.mxu0 0.0
    %347 = vmatprep.mubr.f32.mxu0 0.0
    %348 = vmatmul.mubr.f32.gmra.mrb[0].mxu0 %v281
    %v349 = vpop.f32.mrb[0].mxu0
    %v350 = vadd.f32 0.0, %v349
    %v351 = vpop.f32.mrb[0].mxu0
    %v352 = vadd.f32 0.0, %v351
    %353 = vdwg.mxu0
    %354 = vmatprep.subr.mxu0 0.0
    %355 = vmatpush1.msra.mxu0 %v263
    %356 = vmatprep.subr.mxu0 0.0
    %357 = vmatpush1.msra.mxu0 %v266
    %358 = vmatprep.subr.mxu0 0.0
    %359 = vmatpush1.msra.mxu0 %v269
    %360 = vmatprep.subr.mxu0 0.0
    %361 = vmatpush1.msra.mxu0 %v272
    %362 = vmatprep.subr.mxu0 0.0
    %363 = vmatpush1.msra.mxu0 %v275
    %364 = vmatprep.subr.mxu0 0.0
    %365 = vmatpush1.msra.mxu0 %v278
    %366 = vmatprep.subr.mxu0 0.0
    %367 = vmatpush1.msra.mxu0 0.0
    %368 = vmatprep.subr.mxu0 0.0
    %369 = vmatpush1.msra.mxu0 0.0
    %370 = vmatprep.subr.mxu0 0.0
    %371 = vmatpush1.msra.mxu0 0.0
    %372 = vmatprep.subr.mxu0 0.0
    %373 = vmatpush1.msra.mxu0 0.0
    %374 = vmatprep.subr.mxu0 0.0
    %375 = vmatpush1.msra.mxu0 0.0
    %376 = vmatprep.subr.mxu0 0.0
    %377 = vmatpush1.msra.mxu0 0.0
    %378 = vmatprep.subr.mxu0 0.0
    %379 = vmatpush1.msra.mxu0 0.0
    %380 = vmatprep.subr.mxu0 0.0
    %381 = vmatpush1.msra.mxu0 0.0
    %382 = vmatprep.subr.mxu0 0.0
    %383 = vmatpush1.msra.mxu0 0.0
    %384 = vmatprep.subr.mxu0 0.0
    %385 = vmatpush1.msra.mxu0 0.0
    %386 = vmatprep.subr.mxu0 0.0
    %387 = vmatpush1.msra.mxu0 0.0
    %388 = vmatprep.subr.mxu0 0.0
    %389 = vmatpush1.msra.mxu0 0.0
    %390 = vmatprep.subr.mxu0 0.0
    %391 = vmatpush1.msra.mxu0 0.0
    %392 = vmatprep.subr.mxu0 0.0
    %393 = vmatpush1.msra.mxu0 0.0
    %394 = vmatprep.subr.mxu0 0.0
    %395 = vmatpush1.msra.mxu0 0.0
    %396 = vmatprep.subr.mxu0 0.0
    %397 = vmatpush1.msra.mxu0 0.0
    %398 = vmatprep.subr.mxu0 0.0
    %399 = vmatpush1.msra.mxu0 0.0
    %400 = vmatprep.subr.mxu0 0.0
    %401 = vmatpush1.msra.mxu0 0.0
    %402 = vmatprep.subr.mxu0 0.0
    %403 = vmatpush1.msra.mxu0 0.0
    %404 = vmatprep.subr.mxu0 0.0
    %405 = vmatpush1.msra.mxu0 0.0
    %406 = vmatprep.subr.mxu0 0.0
    %407 = vmatpush1.msra.mxu0 0.0
    %408 = vmatprep.subr.mxu0 0.0
    %409 = vmatpush1.msra.mxu0 0.0
    %410 = vmatprep.subr.mxu0 0.0
    %411 = vmatpush1.msra.mxu0 0.0
    %412 = vmatprep.subr.mxu0 0.0
    %413 = vmatpush1.msra.mxu0 0.0
    %414 = vmatprep.subr.mxu0 0.0
    %415 = vmatpush1.msra.mxu0 0.0
    %416 = vmatprep.subr.mxu0 0.0
    %417 = vmatpush1.msra.mxu0 0.0
    %418 = vmatprep.mubr.f32.mxu0 0.0
    %419 = vmatmul.mubr.f32.gmra.mrb[0].mxu0 %v281
    %v420 = vpop.f32.mrb[0].mxu0
    %v421 = vadd.f32 0.0, %v420
    %v422 = vpop.f32.mrb[0].mxu0
    %423 = vdwg.mxu0
    %v424 = vld [vmem:[%s6] sm:$0xff]
    %v425 = vld [vmem:[%s6 + $0x8] sm:$0xf]
    %v426 = vadd.f32 %v189, %v352
    %v427 = vlaneseq
    %v428 = vshrl.u32 %v427, 7
    %v429 = vsub.s32 2, %v428
    %v430 = vrot.slane %v424, %v429
    %v431 = vadd.f32 %v426, %v430
    %v432 = vxor.u32 %v431, 2147483648
    %v433 = vmul.f32 %v432, 1.442695
    %v434 = vpow.pop %v433
    %v435 = vadd.f32 %v434, 1.0
    %v436 = vrcp.pop %v435
    %v437 = vmul.f32 1.0, %v436
    %v438 = vadd.f32 %v258, %v421
    %v439 = vlaneseq
    %v440 = vshrl.u32 %v439, 7
    %v441 = vsub.s32 3, %v440
    %v442 = vrot.slane %v424, %v441
    %v443 = vadd.f32 %v438, %v442
    %v444 = vxor.u32 %v443, 2147483648
    %v445 = vmul.f32 %v444, 1.442695
    %v446 = vpow.pop %v445
    %v447 = vadd.f32 %v446, 1.0
    %v448 = vrcp.pop %v447
    %v449 = vmul.f32 1.0, %v448
    %v450 = vlaneseq
    %v451 = vshrl.u32 %v450, 7
    %v452 = vsub.s32 0, %v451
    %v453 = vrot.slane %v424, %v452
    %v454 = vadd.f32 %v187, %v453
    %455 = vadd.xlane.f32.xlu0 %v454
    %v456 = vpop.xlane.xlu0 %455
    %v457 = vmul.f32 %v456, 0.03125
    %v458 = vsub.f32 %v454, %v457
    %v459 = vlaneseq
    %v460 = vshrl.u32 %v459, 7
    %v461 = vsub.s32 3, %v460
    %v462 = vrot.slane %v425, %v461
    %v463 = vmul.f32 %v458, %v462
    %v464 = vmul.f32 %v463, %v463
    %465 = vadd.xlane.f32.xlu0 %v464
    %v466 = vpop.xlane.xlu0 %465
    %v467 = vmul.f32 %v466, 0.03125
    %v468 = vadd.f32 %v467, 1e-05
    %v469 = vrsqrt.pop %v468
    %v470 = vmul.f32 %v463, %v469
    %v471 = vlaneseq
    %v472 = vshrl.u32 %v471, 7
    %v473 = vsub.s32 4, %v472
    %v474 = vrot.slane %v424, %v473
    %v475 = vmul.f32 %v470, %v474
    %v476 = vlaneseq
    %v477 = vshrl.u32 %v476, 7
    %v478 = vsub.s32 5, %v477
    %v479 = vrot.slane %v424, %v478
    %v480 = vadd.f32 %v475, %v479
    %v481 = vmul.f32 %v480, 0.5
    %v482 = vmul.f32 %v480, 0.70710677
    %v483 = verf.f32.pop %v482
    %v484 = vadd.f32 %v483, 1.0
    %v485 = vmul.f32 %v481, %v484
    %v486 = vlaneseq
    %v487 = vshrl.u32 %v486, 7
    %v488 = vsub.s32 1, %v487
    %v489 = vrot.slane %v424, %v488
    %v490 = vadd.f32 %v350, %v489
    %491 = vadd.xlane.f32.xlu0 %v490
    %v492 = vpop.xlane.xlu0 %491
    %v493 = vmul.f32 %v492, 0.03125
    %v494 = vsub.f32 %v490, %v493
    %v495 = vmul.f32 %v494, %v462
    %v496 = vmul.f32 %v495, %v495
    %497 = vadd.xlane.f32.xlu0 %v496
    %v498 = vpop.xlane.xlu0 %497
    %v499 = vmul.f32 %v498, 0.03125
    %v500 = vadd.f32 %v499, 1e-05
    %v501 = vrsqrt.pop %v500
    %v502 = vmul.f32 %v495, %v501
    %v503 = vlaneseq
    %v504 = vshrl.u32 %v503, 7
    %v505 = vsub.s32 6, %v504
    %v506 = vrot.slane %v424, %v505
    %v507 = vmul.f32 %v502, %v506
    %v508 = vlaneseq
    %v509 = vshrl.u32 %v508, 7
    %v510 = vsub.s32 7, %v509
    %v511 = vrot.slane %v424, %v510
    %v512 = vadd.f32 %v507, %v511
    %v513 = vmul.f32 %v512, 0.5
    %v514 = vmul.f32 %v512, 0.70710677
    %v515 = verf.f32.pop %v514
    %v516 = vadd.f32 %v515, 1.0
    %v517 = vmul.f32 %v513, %v516
    %v518 = vmul.f32 %v485, %v437
    %v519 = vmul.f32 %v517, %v449
    %v520 = vadd.f32 %v518, %v519
    %v521 = vld [vmem:[#allocation12] sm:$0xff]
    %v522 = vld [vmem:[#allocation12 + $0x8] sm:$0xff]
    %v523 = vld [vmem:[#allocation12 + $0x10] sm:$0xff]
    %v524 = vld [vmem:[#allocation12 + $0x18] sm:$0xff]
    %v525 = vld [vmem:[#allocation12 + $0x20] sm:$0xff]
    %v526 = vld [vmem:[#allocation12 + $0x28] sm:$0xff]
    %v527 = vld [vmem:[#allocation12 + $0x30] sm:$0xff]
    %v528 = vld [vmem:[#allocation12 + $0x38] sm:$0xff]
    %v529 = vld [vmem:[#allocation12 + $0x40] sm:$0xff]
    %v530 = vld [vmem:[#allocation12 + $0x48] sm:$0xff]
    %v531 = vld [vmem:[#allocation12 + $0x50] sm:$0xff]
    %v532 = vld [vmem:[#allocation12 + $0x58] sm:$0xff]
    %v533 = vld [vmem:[#allocation12 + $0x60] sm:$0xff]
    %v534 = vld [vmem:[#allocation12 + $0x68] sm:$0xff]
    %v535 = vld [vmem:[#allocation12 + $0x70] sm:$0xff]
    %v536 = vld [vmem:[#allocation12 + $0x78] sm:$0xff]
    %v537 = vlaneseq
    %v538 = vshrl.u32 %v537, 7
    %v539 = vsub.s32 0, %v538
    %v540 = vrot.slane %v425, %v539
    %541 = vmatprep.subr.mxu0 0.0
    %542 = vmatpush1.msra.mxu0 %v521
    %543 = vmatprep.subr.mxu0 0.0
    %544 = vmatpush1.msra.mxu0 %v522
    %545 = vmatprep.subr.mxu0 0.0
    %546 = vmatpush1.msra.mxu0 %v523
    %547 = vmatprep.subr.mxu0 0.0
    %548 = vmatpush1.msra.mxu0 %v524
    %549 = vmatprep.subr.mxu0 0.0
    %550 = vmatpush1.msra.mxu0 %v525
    %551 = vmatprep.subr.mxu0 0.0
    %552 = vmatpush1.msra.mxu0 %v526
    %553 = vmatprep.subr.mxu0 0.0
    %554 = vmatpush1.msra.mxu0 %v527
    %555 = vmatprep.subr.mxu0 0.0
    %556 = vmatpush1.msra.mxu0 %v528
    %557 = vmatprep.subr.mxu0 0.0
    %558 = vmatpush1.msra.mxu0 %v529
    %559 = vmatprep.subr.mxu0 0.0
    %560 = vmatpush1.msra.mxu0 %v530
    %561 = vmatprep.subr.mxu0 0.0
    %562 = vmatpush1.msra.mxu0 %v531
    %563 = vmatprep.subr.mxu0 0.0
    %564 = vmatpush1.msra.mxu0 %v532
    %565 = vmatprep.subr.mxu0 0.0
    %566 = vmatpush1.msra.mxu0 %v533
    %567 = vmatprep.subr.mxu0 0.0
    %568 = vmatpush1.msra.mxu0 %v534
    %569 = vmatprep.subr.mxu0 0.0
    %570 = vmatpush1.msra.mxu0 %v535
    %571 = vmatprep.subr.mxu0 0.0
    %572 = vmatpush1.msra.mxu0 %v536
    %573 = vmatprep.subr.mxu0 0.0
    %574 = vmatpush1.msra.mxu0 0.0
    %575 = vmatprep.subr.mxu0 0.0
    %576 = vmatpush1.msra.mxu0 0.0
    %577 = vmatprep.subr.mxu0 0.0
    %578 = vmatpush1.msra.mxu0 0.0
    %579 = vmatprep.subr.mxu0 0.0
    %580 = vmatpush1.msra.mxu0 0.0
    %581 = vmatprep.subr.mxu0 0.0
    %582 = vmatpush1.msra.mxu0 0.0
    %583 = vmatprep.subr.mxu0 0.0
    %584 = vmatpush1.msra.mxu0 0.0
    %585 = vmatprep.subr.mxu0 0.0
    %586 = vmatpush1.msra.mxu0 0.0
    %587 = vmatprep.subr.mxu0 0.0
    %588 = vmatpush1.msra.mxu0 0.0
    %589 = vmatprep.subr.mxu0 0.0
    %590 = vmatpush1.msra.mxu0 0.0
    %591 = vmatprep.subr.mxu0 0.0
    %592 = vmatpush1.msra.mxu0 0.0
    %593 = vmatprep.subr.mxu0 0.0
    %594 = vmatpush1.msra.mxu0 0.0
    %595 = vmatprep.subr.mxu0 0.0
    %596 = vmatpush1.msra.mxu0 0.0
    %597 = vmatprep.subr.mxu0 0.0
    %598 = vmatpush1.msra.mxu0 0.0
    %599 = vmatprep.subr.mxu0 0.0
    %600 = vmatpush1.msra.mxu0 0.0
    %601 = vmatprep.subr.mxu0 0.0
    %602 = vmatpush1.msra.mxu0 0.0
    %603 = vmatprep.subr.mxu0 0.0
    %604 = vmatpush1.msra.mxu0 0.0
    %605 = vmatprep.mubr.f32.mxu0 0.0
    %606 = vmatmul.mubr.f32.gmra.mrb[0].mxu0 %v520
    %v607 = vpop.f32.mrb[0].mxu0
    %v608 = vadd.f32 %v540, %v607
    %v609 = vpop.f32.mrb[0].mxu0
    %610 = vdwg.mxu0
    %611 = vadd.xlane.f32.xlu0 %v608
    %v612 = vpop.xlane.xlu0 %611
    %v613 = vmul.f32 %v612, 0.03125
    %v614 = vsub.f32 %v608, %v613
    %v615 = vmul.f32 %v614, %v462
    %v616 = vmul.f32 %v615, %v615
    %617 = vadd.xlane.f32.xlu0 %v616
    %v618 = vpop.xlane.xlu0 %617
    %v619 = vmul.f32 %v618, 0.03125
    %v620 = vadd.f32 %v619, 1e-05
    %v621 = vrsqrt.pop %v620
    %v622 = vmul.f32 %v615, %v621
    %v623 = vlaneseq
    %v624 = vshrl.u32 %v623, 7
    %v625 = vsub.s32 1, %v624
    %v626 = vrot.slane %v425, %v625
    %v627 = vmul.f32 %v622, %v626
    %v628 = vlaneseq
    %v629 = vshrl.u32 %v628, 7
    %v630 = vsub.s32 2, %v629
    %v631 = vrot.slane %v425, %v630
    %v632 = vadd.f32 %v627, %v631
    %633 = vst [vmem:[#allocation13] sm:$0xff] %v632
    // Predicated region
    $region46: #{forward.1} parent=1 // pred_check
      _
    $region47: #{forward.1} parent=1 // pred_check_branch
      %635 = sbr.rel (0) target = $region49
    $region48: #{forward.1} parent=1 // pred_region
      %s637 = ssub.s32 128, 128
      %638 = vsyncadd [#allocation6], %s637
      %s640 = sshll.u32 [#allocation13], 4
      %s641 = int_to_ptr.vmem [resolvable:$true] %s640
      %643 = dma.vmem_to_hbm [thread:$0]  %s641, 128, %s7, [#allocation6]
    $region49: #{forward.1} parent=1 // pred_fallthru
      _
    // Predicated region
    $region50: #{forward.1} parent=1 // pred_check
      _
    $region51: #{forward.1} parent=1 // pred_check_branch
      %645 = sbr.rel (0) target = $region53
    $region52: #{forward.1} parent=1 // pred_region
      %646 = dma.done [#allocation6], 128
    $region53: #{forward.1} parent=1 // pred_fallthru
      _
    %647 = vsyncpa [#allocation5], 1
    %648 = vsyncpa [#allocation8], 1
    %649 = vsyncpa [#allocation11], 1
    %650 = vsyncpa [#allocation6], 1

</llo_original>
